<compile_context>
chip_gen: v7x
topology: tpu7x:2x2x1
jax: 0.10.0
libtpu: 0.0.40
codegen_flags: <defaults>
</compile_context>

<pallas_src>
import functools

import jax
import jax.numpy as jnp
from jax.experimental import pallas as pl
from jax.experimental.pallas import tpu as pltpu


# ---------------------------------------------------------------------------
# Chip-generation-aware budgets.
def _round_up(x, m):
    return ((x + m - 1) // m) * m


@functools.lru_cache(maxsize=None)
def _chip_config():
    vmem_cap = 128 << 20
    try:
        vmem_cap = int(getattr(pltpu.get_tpu_info(), "vmem_capacity_bytes",
                               vmem_cap))
    except Exception:  # interpret mode / older runtimes: fall back to v6e-ish
        pass
    if vmem_cap <= (80 << 20):
        # v7x-class: 64 MiB VMEM per TensorCore, 2 TCs per chip.
        return {"max_fused_block": 11 << 20, "vmem_limit_cap": 52 << 20,
                "two_pass_target": 2 << 20, "multi_tc": True}
    # v5e / v6e: 128 MiB VMEM, single TensorCore.
    return {"max_fused_block": 24 << 20, "vmem_limit_cap": 100 << 20,
            "two_pass_target": 4 << 20, "multi_tc": False}


def _vmem_limit(block_bytes, cfg):
    # in + out, each double buffered, plus headroom for weights / scratch.
    want = 4 * block_bytes + (4 << 20)
    return int(min(max(want, 16 << 20), cfg["vmem_limit_cap"]))


def _pick_hw_tile(hwp, c, itemsize, target_bytes):
    """Largest multiple-of-128 divisor of hwp whose block C*tile*itemsize fits
    the per-chip target (multi-MiB blocks sit near the HBM roofline)."""
    units = max(hwp // 128, 1)
    best = 1
    for d in range(1, units + 1):
        if units % d:
            continue
        if d * 128 * c * itemsize <= target_bytes:
            best = d
    return best * 128


def _pick_batch_block(n, per_n_bytes, max_block_bytes, multi_tc):
    """Largest divisor Nb of n whose block fits the VMEM budget.  Only on
    multi-TC chips (v7x) do we insist on >= 2 remaining grid steps."""
    best = 1
    for d in range(1, n + 1):
        if n % d:
            continue
        if d * per_n_bytes > max_block_bytes:
            continue
        if multi_tc and n >= 2 and n // d < 2:
            continue
        best = d
    return best


# ---------------------------------------------------------------------------
# Path 1: fused single-pass kernel.
def _ca_fused_kernel(x_ref, w1t_ref, b1_ref, w2t_ref, b2_ref, o_ref,
                     *, inv_hw, use_mxu):
    # AdaptiveAvgPool2d(1): sum over HW, accumulate in f32 (the upcast fuses
    # into the reduction; no full-size f32 copy is kept live).
    y = jnp.sum(x_ref[...], axis=2, dtype=jnp.float32) * inv_hw      # (Nb, C)

    if use_mxu:
        h = jnp.dot(y, w1t_ref[...], preferred_element_type=jnp.float32)
        h = jnp.maximum(h + b1_ref[...], 0.0)                        # (Nb, C//8)
        s = jnp.dot(h, w2t_ref[...], preferred_element_type=jnp.float32)
        s = jax.nn.sigmoid(s + b2_ref[...])                          # (Nb, C)
    else:
        # Tiny Nb: run the 1x1 convs on the VPU/XLU (a 1-wide MXU matmul pays
        # full push/pop latency).  Either branch is filler under the block DMA.
        h = jnp.sum(y[:, :, None] * w1t_ref[...][None, :, :], axis=1)
        h = jnp.maximum(h + b1_ref[...], 0.0)                        # (Nb, C//8)
        s = jnp.sum(h[:, :, None] * w2t_ref[...][None, :, :], axis=1)
        s = jax.nn.sigmoid(s + b2_ref[...])                          # (Nb, C)

    # Re-read x in its native dtype; multiply + store stay in that dtype so
    # bf16 inputs keep bf16 HBM traffic on the write side too.
    x = x_ref[...]
    o_ref[...] = (x * s.astype(x.dtype)[:, :, None]).astype(o_ref.dtype)


def _ca_fused(x_flat, w1, b1, w2, b2, hw_true, nb, cfg):
    N, C, HW = x_flat.shape
    C8 = w1.shape[0]
    itemsize = jnp.dtype(x_flat.dtype).itemsize
    block_bytes = nb * C * HW * itemsize

    kernel = functools.partial(
        _ca_fused_kernel, inv_hw=1.0 / float(hw_true), use_mxu=(nb >= 8))

    return pl.pallas_call(
        kernel,
        out_shape=jax.ShapeDtypeStruct((N, C, HW), x_flat.dtype),
        grid_spec=pltpu.PrefetchScalarGridSpec(
            num_scalar_prefetch=0,
            grid=(N // nb,),
            in_specs=[
                # Full-extent (C, HW) trailing dims: legal without padding.
                pl.BlockSpec((nb, C, HW), lambda n: (n, 0, 0)),
                pl.BlockSpec((C, C8), lambda n: (0, 0)),
                pl.BlockSpec((1, C8), lambda n: (0, 0)),
                pl.BlockSpec((C8, C), lambda n: (0, 0)),
                pl.BlockSpec((1, C), lambda n: (0, 0)),
            ],
            out_specs=pl.BlockSpec((nb, C, HW), lambda n: (n, 0, 0)),
        ),
        compiler_params=pltpu.CompilerParams(
            dimension_semantics=("parallel",),
            vmem_limit_bytes=_vmem_limit(block_bytes, cfg)),
    )(x_flat, w1.T, b1.reshape(1, C8), w2.T, b2.reshape(1, C))


# ---------------------------------------------------------------------------
# Path 2: two-pass tiled fallback for large feature maps.
def _pool_sum_kernel(x_ref, s_ref):
    @pl.when(pl.program_id(2) == 0)
    def _():
        s_ref[...] = jnp.zeros_like(s_ref)
    # x_ref: (C, hw_tile); accumulate per-channel spatial sums in f32.
    s_ref[...] += jnp.sum(x_ref[...], axis=1, keepdims=True, dtype=jnp.float32)


def _scale_kernel(x_ref, s_ref, o_ref):
    x = x_ref[...]                                              # (C, hw_tile)
    o_ref[...] = (x * s_ref[...].astype(x.dtype)).astype(o_ref.dtype)


def _ca_two_pass(x_flat, w1, b1, w2, b2, hw_true, hw_tile, cfg):
    N, C, HWp = x_flat.shape
    n_t = HWp // hw_tile
    itemsize = jnp.dtype(x_flat.dtype).itemsize
    tile_bytes = C * hw_tile * itemsize

    # Pass A: tiled per-channel spatial sums.  On v7x with a single image,
    # split the HW tiles over a leading parallel axis so both TensorCores
    # share the pooling read; partial sums are added in the JAX step below.
    n_split = 2 if (cfg["multi_tc"] and N == 1 and n_t >= 2 and n_t % 2 == 0) else 1
    tps = n_t // n_split

    partial = pl.pallas_call(
        _pool_sum_kernel,
        out_shape=jax.ShapeDtypeStruct((N, n_split, C, 1), jnp.float32),
        grid_spec=pltpu.PrefetchScalarGridSpec(
            num_scalar_prefetch=0,
            grid=(N, n_split, tps),
            in_specs=[pl.BlockSpec((None, C, hw_tile),
                                   lambda n, h, t: (n, 0, h * tps + t))],
            out_specs=pl.BlockSpec((None, None, C, 1),
                                   lambda n, h, t: (n, h, 0, 0)),
        ),
        compiler_params=pltpu.CompilerParams(
            dimension_semantics=("parallel", "parallel", "arbitrary"),
            vmem_limit_bytes=_vmem_limit(tile_bytes, cfg)),
    )(x_flat)

    # Squeeze/excite on the pooled (N, C) vector: a few KFLOPs -> plain JAX.
    y = jnp.sum(partial, axis=1)[:, :, 0] * (1.0 / float(hw_true))    # (N, C)
    h = jnp.maximum(y @ w1.T.astype(jnp.float32) + b1.astype(jnp.float32), 0.0)
    s = jax.nn.sigmoid(h @ w2.T.astype(jnp.float32) + b2.astype(jnp.float32))
    s = s.reshape(N, C, 1).astype(jnp.float32)

    # Pass B: tiled lane-dense broadcast multiply (both grid axes parallel).
    return pl.pallas_call(
        _scale_kernel,
        out_shape=jax.ShapeDtypeStruct((N, C, HWp), x_flat.dtype),
        grid_spec=pltpu.PrefetchScalarGridSpec(
            num_scalar_prefetch=0,
            grid=(N, n_t),
            in_specs=[
                pl.BlockSpec((None, C, hw_tile), lambda n, t: (n, 0, t)),
                pl.BlockSpec((None, C, 1), lambda n, t: (n, 0, 0)),
            ],
            out_specs=pl.BlockSpec((None, C, hw_tile), lambda n, t: (n, 0, t)),
        ),
        compiler_params=pltpu.CompilerParams(
            dimension_semantics=("parallel", "parallel"),
            vmem_limit_bytes=_vmem_limit(tile_bytes, cfg)),
    )(x_flat, s)


# ---------------------------------------------------------------------------
# Public entry point.
def ca_layer(x, w1, b1, w2, b2, *, force_two_pass=False, hw_tile=None):
    """x: (N, C, H, W); w1: (C//8, C); b1: (C//8,); w2: (C, C//8); b2: (C,)."""
    N, C, H, W = x.shape
    HW = H * W
    itemsize = jnp.dtype(x.dtype).itemsize
    cfg = _chip_config()

    per_n_bytes = C * HW * itemsize
    use_two_pass = (
        force_two_pass
        or per_n_bytes > cfg["max_fused_block"]
        # Only v7x needs a second parallel axis for N == 1 (2 TensorCores).
        or (cfg["multi_tc"] and N == 1 and per_n_bytes >= (2 << 20))
    )

    x_flat = x.reshape(N, C, HW)   # contiguous reshape: metadata only, no copy

    if not use_two_pass:
        nb = _pick_batch_block(N, per_n_bytes, cfg["max_fused_block"],
                               cfg["multi_tc"])
        out = _ca_fused(x_flat, w1, b1, w2, b2, HW, nb, cfg)
        return out.reshape(N, C, H, W)

    # Two-pass path: pad the spatial axis only to a multiple of 128 lanes
    # (zero padding doesn't perturb the sum; we divide by the true H*W).
    HWp = _round_up(HW, 128)
    if HWp != HW:
        x_flat = jnp.pad(x_flat, ((0, 0), (0, 0), (0, HWp - HW)))
    if hw_tile is None or HWp % hw_tile:
        hw_tile = _pick_hw_tile(HWp, C, itemsize, cfg["two_pass_target"])
    out = _ca_two_pass(x_flat, w1, b1, w2, b2, HW, hw_tile, cfg)
    if HWp != HW:
        out = out[:, :, :HW]
    return out.reshape(N, C, H, W)


def ca_layer_ref(x, w1, b1, w2, b2):
    """Pure-JAX reference mirroring the PyTorch forward."""
    y = jnp.mean(x, axis=(2, 3))                                  # (N, C)
    h = jnp.maximum(y @ w1.T + b1, 0.0)                           # (N, C//8)
    s = jax.nn.sigmoid(h @ w2.T + b2)                             # (N, C)
    return x * s[:, :, None, None]


if __name__ == "__main__":
    N, C, H, W = 2, 16, 16, 16   # channel must be a multiple of 8 (C // 8 >= 1)
    C8 = C // 8

    key = jax.random.PRNGKey(0)
    kx, kw1, kb1, kw2, kb2 = jax.random.split(key, 5)
    x = jax.random.normal(kx, (N, C, H, W), dtype=jnp.float32)
    w1 = jax.random.normal(kw1, (C8, C), dtype=jnp.float32) * 0.1
    b1 = jax.random.normal(kb1, (C8,), dtype=jnp.float32) * 0.1
    w2 = jax.random.normal(kw2, (C, C8), dtype=jnp.float32) * 0.1
    b2 = jax.random.normal(kb2, (C,), dtype=jnp.float32) * 0.1

    ref = ca_layer_ref(x, w1, b1, w2, b2)

    # Fused single-pass path.
    out = jax.block_until_ready(ca_layer(x, w1, b1, w2, b2))
    assert out.shape == (N, C, H, W)
    assert jnp.allclose(out, ref, atol=1e-5, rtol=1e-5), "fused path mismatch"

    # Tiled two-pass fallback (normally only for large maps), forced here with
    # two HW tiles so the reduction-accumulator path is covered.
    out2 = jax.block_until_ready(
        ca_layer(x, w1, b1, w2, b2, force_two_pass=True, hw_tile=128))
    assert jnp.allclose(out2, ref, atol=1e-5, rtol=1e-5), "two-pass path mismatch"

    # Odd spatial size -> exercises the unpadded full-extent (ragged-lane)
    # fused path: no wrapper pad/slice copies.
    x_odd = jax.random.normal(kx, (N, C, 9, 13), dtype=jnp.float32)
    ref_odd = ca_layer_ref(x_odd, w1, b1, w2, b2)
    out_odd = jax.block_until_ready(ca_layer(x_odd, w1, b1, w2, b2))
    assert jnp.allclose(out_odd, ref_odd, atol=1e-5, rtol=1e-5), "ragged path mismatch"

    # bf16 path: f32 pool accumulation, bf16 multiply/store (half HBM bytes).
    x_bf = x.astype(jnp.bfloat16)
    ref_bf = ca_layer_ref(x_bf.astype(jnp.float32), w1, b1, w2, b2)
    out_bf = jax.block_until_ready(ca_layer(x_bf, w1, b1, w2, b2))
    assert out_bf.dtype == jnp.bfloat16
    assert jnp.allclose(out_bf.astype(jnp.float32), ref_bf, atol=5e-2, rtol=5e-2), \
        "bf16 path mismatch"

    print("KERNEL_OK")
</pallas_src>

<mosaic_0001>
module attributes {stable_mosaic.version = 11 : i64} {
  func.func @_ca_fused_kernel(%arg0: i32, %arg1: memref<2x16x256xf32, #tpu.memory_space<vmem>>, %arg2: memref<16x2xf32, #tpu.memory_space<vmem>>, %arg3: memref<1x2xf32, #tpu.memory_space<vmem>>, %arg4: memref<2x16xf32, #tpu.memory_space<vmem>>, %arg5: memref<1x16xf32, #tpu.memory_space<vmem>>, %arg6: memref<2x16x256xf32, #tpu.memory_space<vmem>>) attributes {dimension_semantics = [#tpu.dimension_semantics<parallel>], iteration_bounds = array<i64: 1>, scalar_prefetch = 0 : i64, scratch_operands = 0 : i64, tpu.core_type = #tpu.core_type<tc>, window_params = [{transform_indices = @transform_0, window_bounds = array<i64: 2, 16, 256>}, {pipeline_mode = #tpu.pipeline_mode<synchronous>, transform_indices = @transform_1, window_bounds = array<i64: 16, 2>}, {pipeline_mode = #tpu.pipeline_mode<synchronous>, transform_indices = @transform_2, window_bounds = array<i64: 1, 2>}, {pipeline_mode = #tpu.pipeline_mode<synchronous>, transform_indices = @transform_3, window_bounds = array<i64: 2, 16>}, {pipeline_mode = #tpu.pipeline_mode<synchronous>, transform_indices = @transform_4, window_bounds = array<i64: 1, 16>}, {transform_indices = @transform_5, window_bounds = array<i64: 2, 16, 256>}]} {
    %c0 = arith.constant 0 : index
    %c0_0 = arith.constant 0 : index
    %c0_1 = arith.constant 0 : index
    %0 = vector.load %arg1[%c0, %c0_0, %c0_1] : memref<2x16x256xf32, #tpu.memory_space<vmem>>, vector<2x16x256xf32>
    %cst = arith.constant dense<0.000000e+00> : vector<2x16xf32>
    %1 = vector.multi_reduction <add>, %0, %cst [2] : vector<2x16x256xf32> to vector<2x16xf32>
    %cst_2 = arith.constant 3.906250e-03 : f32
    %2 = vector.broadcast %cst_2 : f32 to vector<2x16xf32>
    %3 = arith.mulf %1, %2 : vector<2x16xf32>
    %4 = vector.shape_cast %3 : vector<2x16xf32> to vector<2x16x1xf32>
    %c0_3 = arith.constant 0 : index
    %c0_4 = arith.constant 0 : index
    %5 = vector.load %arg2[%c0_3, %c0_4] : memref<16x2xf32, #tpu.memory_space<vmem>>, vector<16x2xf32>
    %6 = vector.shape_cast %5 : vector<16x2xf32> to vector<1x16x2xf32>
    %7 = vector.broadcast %4 : vector<2x16x1xf32> to vector<2x16x2xf32>
    %8 = vector.broadcast %6 : vector<1x16x2xf32> to vector<2x16x2xf32>
    %9 = arith.mulf %7, %8 : vector<2x16x2xf32>
    %cst_5 = arith.constant dense<0.000000e+00> : vector<2x2xf32>
    %10 = vector.multi_reduction <add>, %9, %cst_5 [1] : vector<2x16x2xf32> to vector<2x2xf32>
    %c0_6 = arith.constant 0 : index
    %c0_7 = arith.constant 0 : index
    %11 = vector.load %arg3[%c0_6, %c0_7] : memref<1x2xf32, #tpu.memory_space<vmem>>, vector<1x2xf32>
    %12 = vector.broadcast %11 : vector<1x2xf32> to vector<2x2xf32>
    %13 = arith.addf %10, %12 : vector<2x2xf32>
    %cst_8 = arith.constant 0.000000e+00 : f32
    %14 = vector.broadcast %cst_8 : f32 to vector<2x2xf32>
    %15 = arith.maximumf %13, %14 : vector<2x2xf32>
    %16 = vector.shape_cast %15 : vector<2x2xf32> to vector<2x2x1xf32>
    %c0_9 = arith.constant 0 : index
    %c0_10 = arith.constant 0 : index
    %17 = vector.load %arg4[%c0_9, %c0_10] : memref<2x16xf32, #tpu.memory_space<vmem>>, vector<2x16xf32>
    %18 = vector.shape_cast %17 : vector<2x16xf32> to vector<1x2x16xf32>
    %19 = vector.broadcast %16 : vector<2x2x1xf32> to vector<2x2x16xf32>
    %20 = vector.broadcast %18 : vector<1x2x16xf32> to vector<2x2x16xf32>
    %21 = arith.mulf %19, %20 : vector<2x2x16xf32>
    %cst_11 = arith.constant dense<0.000000e+00> : vector<2x16xf32>
    %22 = vector.multi_reduction <add>, %21, %cst_11 [1] : vector<2x2x16xf32> to vector<2x16xf32>
    %c0_12 = arith.constant 0 : index
    %c0_13 = arith.constant 0 : index
    %23 = vector.load %arg5[%c0_12, %c0_13] : memref<1x16xf32, #tpu.memory_space<vmem>>, vector<1x16xf32>
    %24 = vector.broadcast %23 : vector<1x16xf32> to vector<2x16xf32>
    %25 = arith.addf %22, %24 : vector<2x16xf32>
    %26 = arith.negf %25 : vector<2x16xf32>
    %27 = math.exp %26 : vector<2x16xf32>
    %cst_14 = arith.constant 1.000000e+00 : f32
    %28 = vector.broadcast %cst_14 : f32 to vector<2x16xf32>
    %29 = arith.addf %28, %27 : vector<2x16xf32>
    %30 = arith.divf %28, %29 : vector<2x16xf32>
    %c0_15 = arith.constant 0 : index
    %c0_16 = arith.constant 0 : index
    %c0_17 = arith.constant 0 : index
    %31 = vector.load %arg1[%c0_15, %c0_16, %c0_17] : memref<2x16x256xf32, #tpu.memory_space<vmem>>, vector<2x16x256xf32>
    %32 = vector.shape_cast %30 : vector<2x16xf32> to vector<2x16x1xf32>
    %33 = vector.broadcast %32 : vector<2x16x1xf32> to vector<2x16x256xf32>
    %34 = arith.mulf %31, %33 : vector<2x16x256xf32>
    %c0_18 = arith.constant 0 : index
    %c0_19 = arith.constant 0 : index
    %c0_20 = arith.constant 0 : index
    %35 = vector.load %arg6[%c0_18, %c0_19, %c0_20] : memref<2x16x256xf32, #tpu.memory_space<vmem>>, vector<2x16x256xf32>
    tpu.vector_store %arg6[%c0_18, %c0_19, %c0_20], %34 {strides = array<i32>} : memref<2x16x256xf32, #tpu.memory_space<vmem>>, vector<2x16x256xf32>,
    return
  }
  func.func @transform_0(%arg0: i32) -> (i32, i32, i32) {
    %c0_i32 = arith.constant 0 : i32
    %c0_i32_0 = arith.constant 0 : i32
    %c0_i32_1 = arith.constant 0 : i32
    return %arg0, %c0_i32, %c0_i32_0 : i32, i32, i32
  }
  func.func @transform_1(%arg0: i32) -> (i32, i32) {
    %c0_i32 = arith.constant 0 : i32
    %c0_i32_0 = arith.constant 0 : i32
    %c0_i32_1 = arith.constant 0 : i32
    return %c0_i32, %c0_i32_0 : i32, i32
  }
  func.func @transform_2(%arg0: i32) -> (i32, i32) {
    %c0_i32 = arith.constant 0 : i32
    %c0_i32_0 = arith.constant 0 : i32
    %c0_i32_1 = arith.constant 0 : i32
    return %c0_i32, %c0_i32_0 : i32, i32
  }
  func.func @transform_3(%arg0: i32) -> (i32, i32) {
    %c0_i32 = arith.constant 0 : i32
    %c0_i32_0 = arith.constant 0 : i32
    %c0_i32_1 = arith.constant 0 : i32
    return %c0_i32, %c0_i32_0 : i32, i32
  }
  func.func @transform_4(%arg0: i32) -> (i32, i32) {
    %c0_i32 = arith.constant 0 : i32
    %c0_i32_0 = arith.constant 0 : i32
    %c0_i32_1 = arith.constant 0 : i32
    return %c0_i32, %c0_i32_0 : i32, i32
  }
  func.func @transform_5(%arg0: i32) -> (i32, i32, i32) {
    %c0_i32 = arith.constant 0 : i32
    %c0_i32_0 = arith.constant 0 : i32
    %c0_i32_1 = arith.constant 0 : i32
    return %arg0, %c0_i32, %c0_i32_0 : i32, i32, i32
  }
}

</mosaic_0001>

<llo_original>
// kernel: tpu_custom_call.1
$region0: #{tpu_custom_call.1}
  #allocation0 [shape = 'u32[]', space=smem, size = 0x4, offset = 0x4, fixed_abs, tag = 'smem constant byte address 0x4 - core index']
  #allocation1 [shape = 'u32[144,128]{1,0:T(1,128)}', space=vmem, size = 0x12000, scoped, tag = 'internal scratch']
  %s0 = inlined_call_operand.hbm [shape: f32[2,16,256], index: 0, kind: input, shape index: {}]
  %s1 = inlined_call_operand.vmem [shape: f32[16,2], index: 1, kind: input, shape index: {}]
  %s2 = inlined_call_operand.vmem [shape: f32[1,2], index: 2, kind: input, shape index: {}]
  %s3 = inlined_call_operand.vmem [shape: f32[2,16], index: 3, kind: input, shape index: {}]
  %s4 = inlined_call_operand.vmem [shape: f32[1,16], index: 4, kind: input, shape index: {}]
  %s5 = inlined_call_operand.hbm [shape: f32[2,16,256], index: 5, kind: output, shape index: {}]
  %s6 = sld [smem:[#allocation0]]
  $region34: #{tpu_custom_call.1} parent=0
    _
  %s8 = ssub.s32 1, %s6
  %s9 = scalar_select 0, %s8, %s6
  $region1: #{tpu_custom_call.1} parent=0
    #allocation2 [shape = 'u8[32768]{0}', space=vmem, size = 0x8000, scoped, tag = 'input window, operand 0, single buffered']
    #allocation3 [shape = 's32[1]{0}', space=sflag, size = 0x4, scoped, tag = 'scoped memory for tpu_custom_call.1']
    #allocation4 [shape = 's32[1]{0}', space=sflag, size = 0x4, scoped, tag = 'scoped memory for tpu_custom_call.1']
    #allocation5 [shape = 'u8[32768]{0}', space=vmem, size = 0x8000, scoped, tag = 'output window, operand 0, single buffered']
    %10 = vsyncpa [#allocation3], 0
    %11 = vsyncpa [#allocation4], 0
    // Predicated region
    $region2: #{tpu_custom_call.1} parent=1 // pred_check
      _
    $region3: #{tpu_custom_call.1} parent=1 // pred_check_branch
      %13 = sbr.rel (0) target = $region5
    $region4: #{tpu_custom_call.1} parent=1 // pred_region
      %s15 = ssub.s32 1024, 1024
      %16 = vsyncadd [#allocation3], %s15
      %s17 = sshll.u32 [#allocation2], 4
      %s18 = int_to_ptr.vmem [resolvable:$true] %s17
      %23 = dma.hbm_to_vmem [thread:$0]  %s0, 1024, %s18, [#allocation3], 256, 256, 16
    $region5: #{tpu_custom_call.1} parent=1 // pred_fallthru
      _
    // Predicated region
    $region6: #{tpu_custom_call.1} parent=1 // pred_check
      _
    $region7: #{tpu_custom_call.1} parent=1 // pred_check_branch
      %25 = sbr.rel (0) target = $region9
    $region8: #{tpu_custom_call.1} parent=1 // pred_region
      _
    $region9: #{tpu_custom_call.1} parent=1 // pred_fallthru
      _
    // Predicated region
    $region10: #{tpu_custom_call.1} parent=1 // pred_check
      _
    $region11: #{tpu_custom_call.1} parent=1 // pred_check_branch
      %27 = sbr.rel (0) target = $region13
    $region12: #{tpu_custom_call.1} parent=1 // pred_region
      _
    $region13: #{tpu_custom_call.1} parent=1 // pred_fallthru
      _
    // Predicated region
    $region14: #{tpu_custom_call.1} parent=1 // pred_check
      _
    $region15: #{tpu_custom_call.1} parent=1 // pred_check_branch
      %29 = sbr.rel (0) target = $region17
    $region16: #{tpu_custom_call.1} parent=1 // pred_region
      _
    $region17: #{tpu_custom_call.1} parent=1 // pred_fallthru
      _
    // Predicated region
    $region18: #{tpu_custom_call.1} parent=1 // pred_check
      _
    $region19: #{tpu_custom_call.1} parent=1 // pred_check_branch
      %31 = sbr.rel (0) target = $region21
    $region20: #{tpu_custom_call.1} parent=1 // pred_region
      _
    $region21: #{tpu_custom_call.1} parent=1 // pred_fallthru
      _
    // Predicated region
    $region22: #{tpu_custom_call.1} parent=1 // pred_check
      _
    $region23: #{tpu_custom_call.1} parent=1 // pred_check_branch
      %33 = sbr.rel (0) target = $region25
    $region24: #{tpu_custom_call.1} parent=1 // pred_region
      %34 = dma.done [#allocation3], 1024
    $region25: #{tpu_custom_call.1} parent=1 // pred_fallthru
      _
    %v35 = vld [vmem:[#allocation2] sm:$0xff]
    %v36 = vld [vmem:[#allocation2 + $0x8] sm:$0xff]
    %v37 = vld [vmem:[#allocation2 + $0x10] sm:$0xff]
    %v38 = vld [vmem:[#allocation2 + $0x18] sm:$0xff]
    %v39 = vld [vmem:[#allocation2 + $0x20] sm:$0xff]
    %v40 = vld [vmem:[#allocation2 + $0x28] sm:$0xff]
    %v41 = vld [vmem:[#allocation2 + $0x30] sm:$0xff]
    %v42 = vld [vmem:[#allocation2 + $0x38] sm:$0xff]
    %v43 = vadd.f32 %v35, %v36
    %44 = vadd.xlane.f32.xlu0 %v43
    %v45 = vpop.xlane.xlu0 %44
    %v46 = vadd.f32 %v37, %v38
    %47 = vadd.xlane.f32.xlu0 %v46
    %v48 = vpop.xlane.xlu0 %47
    %v49 = vadd.f32 %v39, %v40
    %50 = vadd.xlane.f32.xlu0 %v49
    %v51 = vpop.xlane.xlu0 %50
    %v52 = vadd.f32 %v41, %v42
    %53 = vadd.xlane.f32.xlu0 %v52
    %v54 = vpop.xlane.xlu0 %53
    %v55 = vmul.f32 %v45, 0.00390625
    %v56 = vmul.f32 %v48, 0.00390625
    %v57 = vmul.f32 %v51, 0.00390625
    %v58 = vmul.f32 %v54, 0.00390625
    %v59 = vld [vmem:[%s1] sm:$0xff]
    %v60 = vld [vmem:[%s1 + $0x8] sm:$0xff]
    %v61 = vmul.f32 %v55, %v59
    %v62 = vmul.f32 %v56, %v60
    %v63 = vmul.f32 %v57, %v59
    %v64 = vmul.f32 %v58, %v60
    %vm65 = vcmask 15360
    %v66 = vsel %vm65, %v61, 0.0
    %v67 = vsel %vm65, %v62, 0.0
    %v68 = vadd.f32 %v66, %v67
    %v69 = vrot.slane %v68, 4
    %v70 = vadd.f32 %v68, %v69
    %v71 = vrot.slane %v70, 2
    %v72 = vadd.f32 %v70, %v71
    %v73 = vrot.slane %v72, 1
    %v74 = vadd.f32 %v72, %v73
    %v75 = vsel %vm65, %v63, 0.0
    %v76 = vsel %vm65, %v64, 0.0
    %v77 = vadd.f32 %v75, %v76
    %v78 = vrot.slane %v77, 4
    %v79 = vadd.f32 %v77, %v78
    %v80 = vrot.slane %v79, 2
    %v81 = vadd.f32 %v79, %v80
    %v82 = vrot.slane %v81, 1
    %v83 = vadd.f32 %v81, %v82
    %v84 = vld [vmem:[%s2] sm:$0x1]
    %v86 = vlaneseq
    %v87 = vshrl.u32 %v86, 7
    %v88 = vsub.s32 0, %v87
    %v89 = vrot.slane %v84, %v88
    %v91 = vadd.f32 %v74, %v89
    %v92 = vadd.f32 %v83, %v89
    %v93 = vmax.f32 %v91, 0.0
    %v94 = vmax.f32 %v92, 0.0
    %v95 = vlaneseq
    %v96 = vshrl.u32 %v95, 7
    %v97 = vsub.s32 0, %v96
    %v98 = vrot.slane %v93, %v97
    %100 = vbcast.lane.b32.xlu0 %v98, 256
    %v101 = vpop.permute.xlu0 %100
    %v102 = vlaneseq
    %v103 = vshrl.u32 %v102, 7
    %v104 = vsub.s32 0, %v103
    %v105 = vrot.slane %v94, %v104
    %107 = vbcast.lane.b32.xlu0 %v105, 256
    %v108 = vpop.permute.xlu0 %107
    %v109 = vld [vmem:[%s3] sm:$0x3]
    %v110 = vmul.f32 %v101, %v109
    %v111 = vmul.f32 %v108, %v109
    %vm112 = vcmask 123904
    %v113 = vsel %vm112, %v110, 0.0
    %v114 = vrot.slane %v113, 4
    %v115 = vadd.f32 %v113, %v114
    %v116 = vrot.slane %v115, 2
    %v117 = vadd.f32 %v115, %v116
    %v118 = vrot.slane %v117, 1
    %v119 = vadd.f32 %v117, %v118
    %v120 = vsel %vm112, %v111, 0.0
    %v121 = vrot.slane %v120, 4
    %v122 = vadd.f32 %v120, %v121
    %v123 = vrot.slane %v122, 2
    %v124 = vadd.f32 %v122, %v123
    %v125 = vrot.slane %v124, 1
    %v126 = vadd.f32 %v124, %v125
    %v127 = vld [vmem:[%s4] sm:$0x1]
    %v129 = vlaneseq
    %v130 = vshrl.u32 %v129, 7
    %v131 = vsub.s32 0, %v130
    %v132 = vrot.slane %v127, %v131
    %v134 = vadd.f32 %v119, %v132
    %v135 = vadd.f32 %v126, %v132
    %v136 = vxor.u32 %v134, 2147483648
    %v137 = vxor.u32 %v135, 2147483648
    %v138 = vmul.f32 %v136, 1.442695
    %v139 = vpow.pop %v138
    %v140 = vmul.f32 %v137, 1.442695
    %v141 = vpow.pop %v140
    %v142 = vadd.f32 %v139, 1.0
    %v143 = vadd.f32 %v141, 1.0
    %v144 = vrcp.pop %v142
    %v145 = vmul.f32 1.0, %v144
    %v146 = vrcp.pop %v143
    %v147 = vmul.f32 1.0, %v146
    %v148 = vlaneseq
    %v149 = vshrl.u32 %v148, 7
    %v150 = vsub.s32 0, %v149
    %v151 = vrot.slane %v145, %v150
    %153 = vbcast.lane.b32.xlu0 %v151, 256
    %v154 = vpop.permute.xlu0 %153
    %s156 = sor.u32 256, 8
    %157 = vbcast.lane.b32.xlu0 %v151, %s156
    %v158 = vpop.permute.xlu0 %157
    %v159 = vlaneseq
    %v160 = vshrl.u32 %v159, 7
    %v161 = vsub.s32 0, %v160
    %v162 = vrot.slane %v147, %v161
    %164 = vbcast.lane.b32.xlu0 %v162, 256
    %v165 = vpop.permute.xlu0 %164
    %s167 = sor.u32 256, 8
    %168 = vbcast.lane.b32.xlu0 %v162, %s167
    %v169 = vpop.permute.xlu0 %168
    %v170 = vmul.f32 %v35, %v154
    %v171 = vmul.f32 %v36, %v154
    %v172 = vmul.f32 %v37, %v158
    %v173 = vmul.f32 %v38, %v158
    %v174 = vmul.f32 %v39, %v165
    %v175 = vmul.f32 %v40, %v165
    %v176 = vmul.f32 %v41, %v169
    %v177 = vmul.f32 %v42, %v169
    %178 = vst [vmem:[#allocation5] sm:$0xff] %v170
    %179 = vst [vmem:[#allocation5 + $0x8] sm:$0xff] %v171
    %180 = vst [vmem:[#allocation5 + $0x10] sm:$0xff] %v172
    %181 = vst [vmem:[#allocation5 + $0x18] sm:$0xff] %v173
    %182 = vst [vmem:[#allocation5 + $0x20] sm:$0xff] %v174
    %183 = vst [vmem:[#allocation5 + $0x28] sm:$0xff] %v175
    %184 = vst [vmem:[#allocation5 + $0x30] sm:$0xff] %v176
    %185 = vst [vmem:[#allocation5 + $0x38] sm:$0xff] %v177
    // Predicated region
    $region26: #{tpu_custom_call.1} parent=1 // pred_check
      _
    $region27: #{tpu_custom_call.1} parent=1 // pred_check_branch
      %187 = sbr.rel (0) target = $region29
    $region28: #{tpu_custom_call.1} parent=1 // pred_region
      %s189 = ssub.s32 1024, 1024
      %190 = vsyncadd [#allocation4], %s189
      %s191 = sshll.u32 [#allocation5], 4
      %s192 = int_to_ptr.vmem [resolvable:$true] %s191
      %197 = dma.vmem_to_hbm [thread:$0]  %s192, 1024, %s5, [#allocation4], 256, 256, 16
    $region29: #{tpu_custom_call.1} parent=1 // pred_fallthru
      _
    // Predicated region
    $region30: #{tpu_custom_call.1} parent=1 // pred_check
      _
    $region31: #{tpu_custom_call.1} parent=1 // pred_check_branch
      %199 = sbr.rel (0) target = $region33
    $region32: #{tpu_custom_call.1} parent=1 // pred_region
      %200 = dma.done [#allocation4], 1024
    $region33: #{tpu_custom_call.1} parent=1 // pred_fallthru
      _
    %201 = vsyncpa [#allocation3], 1
    %202 = vsyncpa [#allocation4], 1

</llo_original>
